<compile_context>
chip_gen: v5e
topology: v5e:2x2
jax: 0.10.0
libtpu: 0.0.40
codegen_flags: <defaults>
</compile_context>

<pallas_src>
import jax
import jax.numpy as jnp
from jax.experimental import pallas as pl
from jax.experimental.pallas import tpu as pltpu


# ----------------------------- Pallas kernels ------------------------------

def _make_rsoftmax_kernel(radix: int, cardinality: int, rest: int):
    """Kernel over 2-D tiles x_ref/o_ref of shape (bb, cardinality*radix*rest).

    Softmax over the radix axis of the implicit (card, radix, rest) channel
    layout; the (card, radix) swap happens on the output lane-span writes.
    radix / cardinality are small static ints -> loops fully unroll at trace
    time, and every slice start/size is static.
    """

    def kernel(x_ref, o_ref):
        for c in range(cardinality):
            xs = [
                x_ref[:, pl.ds((c * radix + r) * rest, rest)].astype(jnp.float32)
                for r in range(radix)
            ]
            m = xs[0]
            for r in range(1, radix):
                m = jnp.maximum(m, xs[r])
            es = [jnp.exp(xr - m) for xr in xs]
            s = es[0]
            for r in range(1, radix):
                s = s + es[r]
            inv = 1.0 / s  # exact: kernel is HBM-bound, divide is free
            for r in range(radix):
                o_ref[:, pl.ds((r * cardinality + c) * rest, rest)] = (
                    es[r] * inv
                ).astype(o_ref.dtype)

    return kernel


def _sigmoid_kernel(x_ref, o_ref):
    # Elementwise sigmoid on a lane-dense (rows, 128) tile; f32 compute.
    x = x_ref[...].astype(jnp.float32)
    o_ref[...] = (1.0 / (1.0 + jnp.exp(-x))).astype(o_ref.dtype)


# ------------------------------- Helpers ------------------------------------

def _vmem_budgets():
    """(working-set budget, scoped vmem_limit_bytes), generation-aware."""
    try:
        cap = int(pltpu.get_tpu_info().vmem_capacity_bytes)
    except Exception:
        cap = 64 * 1024 * 1024  # conservative (v7x-sized) fallback
    budget = max(8 * 1024 * 1024, cap // 4)   # ~32 MiB v5e/v6e, ~16 MiB v7x
    limit = min(cap // 2, budget * 2)         # ~64 MiB v5e/v6e, ~32 MiB v7x
    return budget, limit


def _pick_block(n: int, bytes_per_row: int, budget_bytes: int,
                prefer_split: bool = True) -> int:
    """Pick a leading block size d for an axis of length n.

    Legal d: a divisor of n with d % 8 == 0 or d == n (the (8,128) rule).
    Prefers the largest legal d that fits the budget; with prefer_split it
    prefers d < n (>=2 grid steps, engages both v7x TensorCores) when such a
    block still fits.  If nothing fits, returns the SMALLEST legal block.
    """
    legal = [d for d in range(n, 0, -1) if n % d == 0 and (d == n or d % 8 == 0)]
    fitting = [d for d in legal if d * bytes_per_row <= budget_bytes]
    if prefer_split:
        split = [d for d in fitting if d < n]
        if split:
            return split[0]
    if fitting:
        return fitting[0]
    return legal[-1]


def _round_up(a: int, b: int) -> int:
    return -(-a // b) * b


# ------------------------------- Wrapper -----------------------------------

def rsoftmax(x, radix: int, cardinality: int):
    """x: (B, C, H, W) array (NCHW, matching the PyTorch module's input)."""
    batch = x.shape[0]
    budget, vmem_limit = _vmem_budgets()

    if radix > 1:
        total = x.size // batch
        rest = total // (cardinality * radix)
        C = cardinality * radix * rest            # == total
        xin = x.reshape(batch, C)                 # free reshape (natural order)

        itemsize = jnp.dtype(x.dtype).itemsize
        # in + out double-buffered tiles + per-group f32 temps.
        per_row_bytes = C * itemsize * 4 + rest * 4 * (radix + 3)
        bb = _pick_block(batch, per_row_bytes, budget, prefer_split=True)
        grid = (batch // bb,)

        out = pl.pallas_call(
            _make_rsoftmax_kernel(radix, cardinality, rest),
            out_shape=jax.ShapeDtypeStruct((batch, C), x.dtype),
            grid_spec=pltpu.PrefetchScalarGridSpec(
                num_scalar_prefetch=0,
                grid=grid,
                in_specs=[pl.BlockSpec((bb, C), lambda i: (i, 0))],
                out_specs=pl.BlockSpec((bb, C), lambda i: (i, 0)),
            ),
            compiler_params=pltpu.CompilerParams(
                dimension_semantics=("parallel",),
                vmem_limit_bytes=vmem_limit),
        )(xin)
        # Output is already in flat (radix, card, rest) order == reshape(B, -1).
        return out

    # ---- radix == 1: elementwise sigmoid, shape preserved ----
    total = x.size
    cols = 128
    padded_total = _round_up(total, 8 * cols)     # lane- AND sublane-friendly
    flat = x.reshape(-1)
    if padded_total != total:
        flat = jnp.pad(flat, (0, padded_total - total))
    rows = padded_total // cols
    flat2d = flat.reshape(rows, cols)

    itemsize = jnp.dtype(x.dtype).itemsize
    per_row_bytes = cols * (itemsize * 4 + 4 * 2)
    rb = _pick_block(rows, per_row_bytes, budget, prefer_split=True)

    out = pl.pallas_call(
        _sigmoid_kernel,
        out_shape=jax.ShapeDtypeStruct((rows, cols), x.dtype),
        grid_spec=pltpu.PrefetchScalarGridSpec(
            num_scalar_prefetch=0,
            grid=(rows // rb,),
            in_specs=[pl.BlockSpec((rb, cols), lambda i: (i, 0))],
            out_specs=pl.BlockSpec((rb, cols), lambda i: (i, 0)),
        ),
        compiler_params=pltpu.CompilerParams(
            dimension_semantics=("parallel",),
            vmem_limit_bytes=vmem_limit),
    )(flat2d)
    return out.reshape(-1)[:total].reshape(x.shape)


# ---------------------------- Pure-JAX reference ----------------------------

def rsoftmax_ref(x, radix, cardinality):
    batch = x.shape[0]
    if radix > 1:
        xr = x.reshape(batch, cardinality, radix, -1)
        xr = jnp.transpose(xr, (0, 2, 1, 3))
        xr = jax.nn.softmax(xr, axis=1)
        return xr.reshape(batch, -1)
    return jax.nn.sigmoid(x)


# ----------------------------------- Main -----------------------------------

if __name__ == "__main__":
    key = jax.random.PRNGKey(0)
    k1, k2, k3 = jax.random.split(key, 3)

    # Case 1: radix > 1, small "rest" (as produced by SplAt fc2, 1x1 spatial).
    batch, radix, cardinality, kk = 2, 2, 4, 8
    C = radix * cardinality * kk
    x = jax.random.normal(k1, (batch, C, 1, 1), dtype=jnp.float32)
    y = jax.block_until_ready(rsoftmax(x, radix, cardinality))
    y_ref = rsoftmax_ref(x, radix, cardinality)
    assert y.shape == (batch, C), y.shape
    assert jnp.allclose(y, y_ref, atol=1e-5, rtol=1e-5), \
        float(jnp.max(jnp.abs(y - y_ref)))

    # Case 2: radix > 1 with lane-aligned rest (rest % 128 == 0) and batch % 8 == 0.
    b2, r2, c2, rest2 = 8, 2, 2, 128
    x2 = jax.random.normal(k2, (b2, r2 * c2 * rest2, 1, 1), dtype=jnp.float32)
    y2 = jax.block_until_ready(rsoftmax(x2, r2, c2))
    y2_ref = rsoftmax_ref(x2, r2, c2)
    assert y2.shape == (b2, r2 * c2 * rest2), y2.shape
    assert jnp.allclose(y2, y2_ref, atol=1e-5, rtol=1e-5), \
        float(jnp.max(jnp.abs(y2 - y2_ref)))

    # Case 3: radix == 1 -> sigmoid path (shape preserved, with lane padding).
    x1 = jax.random.normal(k3, (batch, 16, 1, 1), dtype=jnp.float32)
    y1 = jax.block_until_ready(rsoftmax(x1, radix=1, cardinality=cardinality))
    y1_ref = rsoftmax_ref(x1, 1, cardinality)
    assert y1.shape == x1.shape
    assert jnp.allclose(y1, y1_ref, atol=1e-5, rtol=1e-5), \
        float(jnp.max(jnp.abs(y1 - y1_ref)))

    print("KERNEL_OK")
</pallas_src>

<mosaic_0001>
module attributes {stable_mosaic.version = 11 : i64} {
  func.func @kernel(%arg0: i32, %arg1: memref<2x64xf32, #tpu.memory_space<vmem>>, %arg2: memref<2x64xf32, #tpu.memory_space<vmem>>) attributes {dimension_semantics = [#tpu.dimension_semantics<parallel>], iteration_bounds = array<i64: 1>, scalar_prefetch = 0 : i64, scratch_operands = 0 : i64, tpu.core_type = #tpu.core_type<tc>, window_params = [{transform_indices = @transform_0, window_bounds = array<i64: 2, 64>}, {transform_indices = @transform_1, window_bounds = array<i64: 2, 64>}]} {
    %c0 = arith.constant 0 : index
    %c0_0 = arith.constant 0 : index
    %0 = vector.load %arg1[%c0, %c0_0] : memref<2x64xf32, #tpu.memory_space<vmem>>, vector<2x8xf32>
    %c0_1 = arith.constant 0 : index
    %c8 = arith.constant 8 : index
    %1 = vector.load %arg1[%c0_1, %c8] : memref<2x64xf32, #tpu.memory_space<vmem>>, vector<2x8xf32>
    %2 = arith.maximumf %0, %1 : vector<2x8xf32>
    %3 = arith.subf %0, %2 : vector<2x8xf32>
    %4 = math.exp %3 : vector<2x8xf32>
    %5 = arith.subf %1, %2 : vector<2x8xf32>
    %6 = math.exp %5 : vector<2x8xf32>
    %7 = arith.addf %4, %6 : vector<2x8xf32>
    %cst = arith.constant 1.000000e+00 : f32
    %8 = vector.broadcast %cst : f32 to vector<2x8xf32>
    %9 = arith.divf %8, %7 : vector<2x8xf32>
    %10 = arith.mulf %4, %9 : vector<2x8xf32>
    %c0_2 = arith.constant 0 : index
    %c0_3 = arith.constant 0 : index
    %11 = vector.load %arg2[%c0_2, %c0_3] : memref<2x64xf32, #tpu.memory_space<vmem>>, vector<2x8xf32>
    tpu.vector_store %arg2[%c0_2, %c0_3], %10 {strides = array<i32>} : memref<2x64xf32, #tpu.memory_space<vmem>>, vector<2x8xf32>,
    %12 = arith.mulf %6, %9 : vector<2x8xf32>
    %c0_4 = arith.constant 0 : index
    %c32 = arith.constant 32 : index
    %13 = vector.load %arg2[%c0_4, %c32] : memref<2x64xf32, #tpu.memory_space<vmem>>, vector<2x8xf32>
    tpu.vector_store %arg2[%c0_4, %c32], %12 {strides = array<i32>} : memref<2x64xf32, #tpu.memory_space<vmem>>, vector<2x8xf32>,
    %c0_5 = arith.constant 0 : index
    %c16 = arith.constant 16 : index
    %14 = vector.load %arg1[%c0_5, %c16] : memref<2x64xf32, #tpu.memory_space<vmem>>, vector<2x8xf32>
    %c0_6 = arith.constant 0 : index
    %c24 = arith.constant 24 : index
    %15 = vector.load %arg1[%c0_6, %c24] : memref<2x64xf32, #tpu.memory_space<vmem>>, vector<2x8xf32>
    %16 = arith.maximumf %14, %15 : vector<2x8xf32>
    %17 = arith.subf %14, %16 : vector<2x8xf32>
    %18 = math.exp %17 : vector<2x8xf32>
    %19 = arith.subf %15, %16 : vector<2x8xf32>
    %20 = math.exp %19 : vector<2x8xf32>
    %21 = arith.addf %18, %20 : vector<2x8xf32>
    %cst_7 = arith.constant 1.000000e+00 : f32
    %22 = vector.broadcast %cst_7 : f32 to vector<2x8xf32>
    %23 = arith.divf %22, %21 : vector<2x8xf32>
    %24 = arith.mulf %18, %23 : vector<2x8xf32>
    %c0_8 = arith.constant 0 : index
    %c8_9 = arith.constant 8 : index
    %25 = vector.load %arg2[%c0_8, %c8_9] : memref<2x64xf32, #tpu.memory_space<vmem>>, vector<2x8xf32>
    tpu.vector_store %arg2[%c0_8, %c8_9], %24 {strides = array<i32>} : memref<2x64xf32, #tpu.memory_space<vmem>>, vector<2x8xf32>,
    %26 = arith.mulf %20, %23 : vector<2x8xf32>
    %c0_10 = arith.constant 0 : index
    %c40 = arith.constant 40 : index
    %27 = vector.load %arg2[%c0_10, %c40] : memref<2x64xf32, #tpu.memory_space<vmem>>, vector<2x8xf32>
    tpu.vector_store %arg2[%c0_10, %c40], %26 {strides = array<i32>} : memref<2x64xf32, #tpu.memory_space<vmem>>, vector<2x8xf32>,
    %c0_11 = arith.constant 0 : index
    %c32_12 = arith.constant 32 : index
    %28 = vector.load %arg1[%c0_11, %c32_12] : memref<2x64xf32, #tpu.memory_space<vmem>>, vector<2x8xf32>
    %c0_13 = arith.constant 0 : index
    %c40_14 = arith.constant 40 : index
    %29 = vector.load %arg1[%c0_13, %c40_14] : memref<2x64xf32, #tpu.memory_space<vmem>>, vector<2x8xf32>
    %30 = arith.maximumf %28, %29 : vector<2x8xf32>
    %31 = arith.subf %28, %30 : vector<2x8xf32>
    %32 = math.exp %31 : vector<2x8xf32>
    %33 = arith.subf %29, %30 : vector<2x8xf32>
    %34 = math.exp %33 : vector<2x8xf32>
    %35 = arith.addf %32, %34 : vector<2x8xf32>
    %cst_15 = arith.constant 1.000000e+00 : f32
    %36 = vector.broadcast %cst_15 : f32 to vector<2x8xf32>
    %37 = arith.divf %36, %35 : vector<2x8xf32>
    %38 = arith.mulf %32, %37 : vector<2x8xf32>
    %c0_16 = arith.constant 0 : index
    %c16_17 = arith.constant 16 : index
    %39 = vector.load %arg2[%c0_16, %c16_17] : memref<2x64xf32, #tpu.memory_space<vmem>>, vector<2x8xf32>
    tpu.vector_store %arg2[%c0_16, %c16_17], %38 {strides = array<i32>} : memref<2x64xf32, #tpu.memory_space<vmem>>, vector<2x8xf32>,
    %40 = arith.mulf %34, %37 : vector<2x8xf32>
    %c0_18 = arith.constant 0 : index
    %c48 = arith.constant 48 : index
    %41 = vector.load %arg2[%c0_18, %c48] : memref<2x64xf32, #tpu.memory_space<vmem>>, vector<2x8xf32>
    tpu.vector_store %arg2[%c0_18, %c48], %40 {strides = array<i32>} : memref<2x64xf32, #tpu.memory_space<vmem>>, vector<2x8xf32>,
    %c0_19 = arith.constant 0 : index
    %c48_20 = arith.constant 48 : index
    %42 = vector.load %arg1[%c0_19, %c48_20] : memref<2x64xf32, #tpu.memory_space<vmem>>, vector<2x8xf32>
    %c0_21 = arith.constant 0 : index
    %c56 = arith.constant 56 : index
    %43 = vector.load %arg1[%c0_21, %c56] : memref<2x64xf32, #tpu.memory_space<vmem>>, vector<2x8xf32>
    %44 = arith.maximumf %42, %43 : vector<2x8xf32>
    %45 = arith.subf %42, %44 : vector<2x8xf32>
    %46 = math.exp %45 : vector<2x8xf32>
    %47 = arith.subf %43, %44 : vector<2x8xf32>
    %48 = math.exp %47 : vector<2x8xf32>
    %49 = arith.addf %46, %48 : vector<2x8xf32>
    %cst_22 = arith.constant 1.000000e+00 : f32
    %50 = vector.broadcast %cst_22 : f32 to vector<2x8xf32>
    %51 = arith.divf %50, %49 : vector<2x8xf32>
    %52 = arith.mulf %46, %51 : vector<2x8xf32>
    %c0_23 = arith.constant 0 : index
    %c24_24 = arith.constant 24 : index
    %53 = vector.load %arg2[%c0_23, %c24_24] : memref<2x64xf32, #tpu.memory_space<vmem>>, vector<2x8xf32>
    tpu.vector_store %arg2[%c0_23, %c24_24], %52 {strides = array<i32>} : memref<2x64xf32, #tpu.memory_space<vmem>>, vector<2x8xf32>,
    %54 = arith.mulf %48, %51 : vector<2x8xf32>
    %c0_25 = arith.constant 0 : index
    %c56_26 = arith.constant 56 : index
    %55 = vector.load %arg2[%c0_25, %c56_26] : memref<2x64xf32, #tpu.memory_space<vmem>>, vector<2x8xf32>
    tpu.vector_store %arg2[%c0_25, %c56_26], %54 {strides = array<i32>} : memref<2x64xf32, #tpu.memory_space<vmem>>, vector<2x8xf32>,
    return
  }
  func.func @transform_0(%arg0: i32) -> (i32, i32) {
    %c0_i32 = arith.constant 0 : i32
    %c0_i32_0 = arith.constant 0 : i32
    return %arg0, %c0_i32 : i32, i32
  }
  func.func @transform_1(%arg0: i32) -> (i32, i32) {
    %c0_i32 = arith.constant 0 : i32
    %c0_i32_0 = arith.constant 0 : i32
    return %arg0, %c0_i32 : i32, i32
  }
}

</mosaic_0001>

<llo_original>
// kernel: tpu_custom_call.1
$region0: #{tpu_custom_call.1}
  #allocation0 [shape = 'u32[]', space=smem, size = 0x4, offset = 0x4, fixed_abs, tag = 'smem constant byte address 0x4 - core index']
  #allocation1 [shape = 'u32[72,128]{1,0:T(1,128)}', space=vmem, size = 0x9000, scoped, tag = 'internal scratch']
  %s0 = inlined_call_operand.hbm [shape: f32[2,64], index: 0, kind: input, shape index: {}]
  %s1 = inlined_call_operand.hbm [shape: f32[2,64], index: 1, kind: output, shape index: {}]
  %s2 = sld [smem:[#allocation0]]
  $region18: #{tpu_custom_call.1} parent=0
    _
  %s4 = ssub.s32 1, %s2
  %s5 = scalar_select 0, %s4, %s2
  $region1: #{tpu_custom_call.1} parent=0
    #allocation2 [shape = 'u8[1024]{0}', space=vmem, size = 0x400, scoped, tag = 'input window, operand 0, single buffered']
    #allocation3 [shape = 's32[1]{0}', space=sflag, size = 0x4, scoped, tag = 'scoped memory for tpu_custom_call.1']
    #allocation4 [shape = 's32[1]{0}', space=sflag, size = 0x4, scoped, tag = 'scoped memory for tpu_custom_call.1']
    #allocation5 [shape = 'u8[1024]{0}', space=vmem, size = 0x400, scoped, tag = 'output window, operand 0, single buffered']
    %6 = vsyncpa [#allocation3], 0
    %7 = vsyncpa [#allocation4], 0
    // Predicated region
    $region2: #{tpu_custom_call.1} parent=1 // pred_check
      _
    $region3: #{tpu_custom_call.1} parent=1 // pred_check_branch
      %9 = sbr.rel (0) target = $region5
    $region4: #{tpu_custom_call.1} parent=1 // pred_region
      %11 = vsyncadd [#allocation3], 0
      %s13 = sshll.u32 %s0, 4
      %s14 = int_to_ptr.hbm [resolvable:$true] %s13
      %s15 = sshll.u32 [#allocation2], 4
      %s16 = int_to_ptr.vmem [resolvable:$true] %s15
      %18 = dma.hbm_to_vmem [thread:$0]  %s14, 32, %s16, [#allocation3]
    $region5: #{tpu_custom_call.1} parent=1 // pred_fallthru
      _
    // Predicated region
    $region6: #{tpu_custom_call.1} parent=1 // pred_check
      _
    $region7: #{tpu_custom_call.1} parent=1 // pred_check_branch
      %20 = sbr.rel (0) target = $region9
    $region8: #{tpu_custom_call.1} parent=1 // pred_region
      %22 = dma.done [#allocation3], 32
    $region9: #{tpu_custom_call.1} parent=1 // pred_fallthru
      _
    %v23 = vld [vmem:[#allocation2] sm:$0x3]
    %25 = vrot.lane.b32.xlu0 %v23, 120
    %v26 = vpop.permute.xlu0 %25
    %v28 = vmax.f32 %v23, %v26
    %v29 = vsub.f32 %v23, %v28
    %v30 = vmul.f32 %v29, 1.442695
    %v31 = vpow.pop %v30
    %33 = vrot.lane.b32.xlu0 %v28, 8
    %v34 = vpop.permute.xlu0 %33
    %v36 = vsub.f32 %v23, %v34
    %v37 = vmul.f32 %v36, 1.442695
    %v38 = vpow.pop %v37
    %40 = vrot.lane.b32.xlu0 %v38, 120
    %v41 = vpop.permute.xlu0 %40
    %v43 = vadd.f32 %v31, %v41
    %v44 = vrcp.pop %v43
    %v45 = vmul.f32 %v43, %v44
    %v46 = vsub.f32 1.0, %v45
    %v47 = vmul.f32 %v44, %v46
    %v48 = vadd.f32 %v44, %v47
    %vm49 = vweird.f32 %v43
    %vm50 = vweird.f32 %v44
    %vm51 = vmor %vm49, %vm50
    %v52 = vsel %vm51, %v44, %v48
    %v53 = vand.u32 2147483647, %v43
    %vm54 = vcmp.eq.f32.partialorder %v53, 8.507059e+37
    %v55 = vand.u32 %v43, 2147483648
    %v56 = vor.u32 1.1754944e-38, %v55
    %v57 = vsel %vm54, %v56, %v52
    %v58 = vmul.f32 1.0, %v57
    %v59 = vmul.f32 %v31, %v58
    %vm60 = vcmask 58368
    %61 = vst.msk [vmem:[#allocation5] sm:$0x3] %vm60, %v59
    %63 = vrot.lane.b32.xlu0 %v58, 8
    %v64 = vpop.permute.xlu0 %63
    %v66 = vmul.f32 %v38, %v64
    %68 = vrot.lane.b32.xlu0 %v66, 24
    %v69 = vpop.permute.xlu0 %68
    %vm71 = vcmask 320768
    %72 = vst.msk [vmem:[#allocation5] sm:$0x3] %vm71, %v69
    %v73 = vld [vmem:[#allocation2] sm:$0x3]
    %75 = vrot.lane.b32.xlu0 %v73, 120
    %v76 = vpop.permute.xlu0 %75
    %v78 = vmax.f32 %v73, %v76
    %v79 = vsub.f32 %v73, %v78
    %v80 = vmul.f32 %v79, 1.442695
    %v81 = vpow.pop %v80
    %83 = vrot.lane.b32.xlu0 %v78, 8
    %v84 = vpop.permute.xlu0 %83
    %v86 = vsub.f32 %v73, %v84
    %v87 = vmul.f32 %v86, 1.442695
    %v88 = vpow.pop %v87
    %90 = vrot.lane.b32.xlu0 %v88, 120
    %v91 = vpop.permute.xlu0 %90
    %v93 = vadd.f32 %v81, %v91
    %v94 = vrcp.pop %v93
    %v95 = vmul.f32 %v93, %v94
    %v96 = vsub.f32 1.0, %v95
    %v97 = vmul.f32 %v94, %v96
    %v98 = vadd.f32 %v94, %v97
    %vm99 = vweird.f32 %v93
    %vm100 = vweird.f32 %v94
    %vm101 = vmor %vm99, %vm100
    %v102 = vsel %vm101, %v94, %v98
    %v103 = vand.u32 2147483647, %v93
    %vm104 = vcmp.eq.f32.partialorder %v103, 8.507059e+37
    %v105 = vand.u32 %v93, 2147483648
    %v106 = vor.u32 1.1754944e-38, %v105
    %v107 = vsel %vm104, %v106, %v102
    %v108 = vmul.f32 1.0, %v107
    %v109 = vmul.f32 %v81, %v108
    %111 = vrot.lane.b32.xlu0 %v109, 120
    %v112 = vpop.permute.xlu0 %111
    %vm114 = vcmask 123968
    %115 = vst.msk [vmem:[#allocation5] sm:$0x3] %vm114, %v112
    %117 = vrot.lane.b32.xlu0 %v108, 8
    %v118 = vpop.permute.xlu0 %117
    %v120 = vmul.f32 %v88, %v118
    %122 = vrot.lane.b32.xlu0 %v120, 16
    %v123 = vpop.permute.xlu0 %122
    %vm125 = vcmask 386368
    %126 = vst.msk [vmem:[#allocation5] sm:$0x3] %vm125, %v123
    %v127 = vld [vmem:[#allocation2] sm:$0x3]
    %129 = vrot.lane.b32.xlu0 %v127, 120
    %v130 = vpop.permute.xlu0 %129
    %v132 = vmax.f32 %v127, %v130
    %v133 = vsub.f32 %v127, %v132
    %v134 = vmul.f32 %v133, 1.442695
    %v135 = vpow.pop %v134
    %137 = vrot.lane.b32.xlu0 %v132, 8
    %v138 = vpop.permute.xlu0 %137
    %v140 = vsub.f32 %v127, %v138
    %v141 = vmul.f32 %v140, 1.442695
    %v142 = vpow.pop %v141
    %144 = vrot.lane.b32.xlu0 %v142, 120
    %v145 = vpop.permute.xlu0 %144
    %v147 = vadd.f32 %v135, %v145
    %v148 = vrcp.pop %v147
    %v149 = vmul.f32 %v147, %v148
    %v150 = vsub.f32 1.0, %v149
    %v151 = vmul.f32 %v148, %v150
    %v152 = vadd.f32 %v148, %v151
    %vm153 = vweird.f32 %v147
    %vm154 = vweird.f32 %v148
    %vm155 = vmor %vm153, %vm154
    %v156 = vsel %vm155, %v148, %v152
    %v157 = vand.u32 2147483647, %v147
    %vm158 = vcmp.eq.f32.partialorder %v157, 8.507059e+37
    %v159 = vand.u32 %v147, 2147483648
    %v160 = vor.u32 1.1754944e-38, %v159
    %v161 = vsel %vm158, %v160, %v156
    %v162 = vmul.f32 1.0, %v161
    %v163 = vmul.f32 %v135, %v162
    %165 = vrot.lane.b32.xlu0 %v163, 112
    %v166 = vpop.permute.xlu0 %165
    %vm168 = vcmask 189568
    %169 = vst.msk [vmem:[#allocation5] sm:$0x3] %vm168, %v166
    %171 = vrot.lane.b32.xlu0 %v162, 8
    %v172 = vpop.permute.xlu0 %171
    %v174 = vmul.f32 %v142, %v172
    %176 = vrot.lane.b32.xlu0 %v174, 8
    %v177 = vpop.permute.xlu0 %176
    %vm179 = vcmask 451968
    %180 = vst.msk [vmem:[#allocation5] sm:$0x3] %vm179, %v177
    %v181 = vld [vmem:[#allocation2] sm:$0x3]
    %183 = vrot.lane.b32.xlu0 %v181, 120
    %v184 = vpop.permute.xlu0 %183
    %v186 = vmax.f32 %v181, %v184
    %v187 = vsub.f32 %v181, %v186
    %v188 = vmul.f32 %v187, 1.442695
    %v189 = vpow.pop %v188
    %191 = vrot.lane.b32.xlu0 %v186, 8
    %v192 = vpop.permute.xlu0 %191
    %v194 = vsub.f32 %v181, %v192
    %v195 = vmul.f32 %v194, 1.442695
    %v196 = vpow.pop %v195
    %198 = vrot.lane.b32.xlu0 %v196, 120
    %v199 = vpop.permute.xlu0 %198
    %v201 = vadd.f32 %v189, %v199
    %v202 = vrcp.pop %v201
    %v203 = vmul.f32 %v201, %v202
    %v204 = vsub.f32 1.0, %v203
    %v205 = vmul.f32 %v202, %v204
    %v206 = vadd.f32 %v202, %v205
    %vm207 = vweird.f32 %v201
    %vm208 = vweird.f32 %v202
    %vm209 = vmor %vm207, %vm208
    %v210 = vsel %vm209, %v202, %v206
    %v211 = vand.u32 2147483647, %v201
    %vm212 = vcmp.eq.f32.partialorder %v211, 8.507059e+37
    %v213 = vand.u32 %v201, 2147483648
    %v214 = vor.u32 1.1754944e-38, %v213
    %v215 = vsel %vm212, %v214, %v210
    %v216 = vmul.f32 1.0, %v215
    %v217 = vmul.f32 %v189, %v216
    %219 = vrot.lane.b32.xlu0 %v217, 104
    %v220 = vpop.permute.xlu0 %219
    %vm222 = vcmask 255168
    %223 = vst.msk [vmem:[#allocation5] sm:$0x3] %vm222, %v220
    %225 = vrot.lane.b32.xlu0 %v216, 8
    %v226 = vpop.permute.xlu0 %225
    %v228 = vmul.f32 %v196, %v226
    %vm229 = vcmask 517568
    %230 = vst.msk [vmem:[#allocation5] sm:$0x3] %vm229, %v228
    // Predicated region
    $region10: #{tpu_custom_call.1} parent=1 // pred_check
      _
    $region11: #{tpu_custom_call.1} parent=1 // pred_check_branch
      %232 = sbr.rel (0) target = $region13
    $region12: #{tpu_custom_call.1} parent=1 // pred_region
      %234 = vsyncadd [#allocation4], 0
      %s236 = sshll.u32 [#allocation5], 4
      %s237 = int_to_ptr.vmem [resolvable:$true] %s236
      %s238 = sshll.u32 %s1, 4
      %s239 = int_to_ptr.hbm [resolvable:$true] %s238
      %241 = dma.vmem_to_hbm [thread:$0]  %s237, 32, %s239, [#allocation4]
    $region13: #{tpu_custom_call.1} parent=1 // pred_fallthru
      _
    // Predicated region
    $region14: #{tpu_custom_call.1} parent=1 // pred_check
      _
    $region15: #{tpu_custom_call.1} parent=1 // pred_check_branch
      %243 = sbr.rel (0) target = $region17
    $region16: #{tpu_custom_call.1} parent=1 // pred_region
      %245 = dma.done [#allocation4], 32
    $region17: #{tpu_custom_call.1} parent=1 // pred_fallthru
      _
    %246 = vsyncpa [#allocation3], 1
    %247 = vsyncpa [#allocation4], 1

</llo_original>
